<compile_context>
chip_gen: v7x
topology: tpu7x:2x2x1
jax: 0.10.0
libtpu: 0.0.40
codegen_flags: <defaults>
</compile_context>

<pallas_src>
import math

import jax
import jax.numpy as jnp
from jax.experimental import pallas as pl
from jax.experimental.pallas import tpu as pltpu


def _pemf_kernel(uid_ref, iid_ref, ut_ref, it_ref, pe_ref, out_ref):
    """Fused gather + scale + PE add + elementwise mul + column (per-batch) sum.

    uid_ref/iid_ref : (1, bm)        int32   batch indices (lane axis = batch)
    ut_ref          : (D, n_users)   f32     user table, transposed, VMEM-resident
    it_ref          : (D, m_items)   f32     item table, transposed, VMEM-resident
    pe_ref          : (D, bm)        f32     positional-encoding window, transposed
    out_ref         : (1, bm)        f32     per-batch scores (lane-dense)
    """
    d = ut_ref.shape[0]
    n_users = ut_ref.shape[1]
    m_items = it_ref.shape[1]
    bm = out_ref.shape[-1]
    scale = jnp.float32(math.sqrt(d))

    uid = uid_ref[...]                                            # (1, bm) int32
    iid = iid_ref[...]                                            # (1, bm) int32

    # One-hot gather on the MXU: table_T (D, n) @ onehot (n, bm) -> (D, bm).
    u_oh = (jax.lax.broadcasted_iota(jnp.int32, (n_users, bm), 0) == uid
            ).astype(jnp.float32)
    i_oh = (jax.lax.broadcasted_iota(jnp.int32, (m_items, bm), 0) == iid
            ).astype(jnp.float32)
    u_t = jnp.dot(ut_ref[...], u_oh, preferred_element_type=jnp.float32)
    i_t = jnp.dot(it_ref[...], i_oh, preferred_element_type=jnp.float32)

    pe = pe_ref[...]                                              # (D, bm)
    p_u = u_t * scale + pe
    q_i = i_t * scale + pe

    # Sublane reduction over D -> naturally lane-dense (1, bm) output.
    out_ref[...] = jnp.sum(p_u * q_i, axis=0, keepdims=True)


def _round_up(x, m):
    return ((x + m - 1) // m) * m


def pemf_scores(user_idx, item_idx, user_embed, item_embed, P, *, block_cols=1024):
    """user_idx/item_idx: int (B,); user_embed (n_users, D); item_embed (m_items, D);
    P (max_len, D).  Returns float32 scores of shape (B,)."""
    B = user_idx.shape[0]
    n_users, D = user_embed.shape
    m_items, D2 = item_embed.shape
    max_len, D3 = P.shape
    assert D == D2 == D3
    assert B <= max_len, f"batch {B} exceeds positional-encoding max_len {max_len}"

    # Batch tile: multiple of 128 (lane-dense), as large as useful, but keep a
    # few grid steps for v7x's two TensorCores.
    bm = min(block_cols, _round_up(B, 128))
    bm = min(bm, max(128, _round_up(pl.cdiv(B, 8), 128)))
    bm = max(bm, 128)
    num_blocks = pl.cdiv(B, bm)
    padded = num_blocks * bm

    # Transposed operands (parameters are tiny; in production store pre-transposed).
    ut = user_embed.T                                  # (D, n_users)
    it = item_embed.T                                  # (D, m_items)
    pt = P.T                                           # (D, max_len)

    uid = user_idx.astype(jnp.int32).reshape(1, B)
    iid = item_idx.astype(jnp.int32).reshape(1, B)
    if padded != B:
        uid = jnp.pad(uid, ((0, 0), (0, padded - B)))
        iid = jnp.pad(iid, ((0, 0), (0, padded - B)))

    out = pl.pallas_call(
        _pemf_kernel,
        out_shape=jax.ShapeDtypeStruct((num_blocks, bm), jnp.float32),
        grid_spec=pltpu.PrefetchScalarGridSpec(
            num_scalar_prefetch=0,
            grid=(num_blocks,),
            in_specs=[
                pl.BlockSpec((1, bm), lambda i: (0, i)),          # user ids
                pl.BlockSpec((1, bm), lambda i: (0, i)),          # item ids
                pl.BlockSpec((D, n_users), lambda i: (0, 0)),     # user table (resident)
                pl.BlockSpec((D, m_items), lambda i: (0, 0)),     # item table (resident)
                pl.BlockSpec((D, bm), lambda i: (0, i)),          # positional encoding
            ],
            out_specs=pl.BlockSpec((1, bm), lambda i: (i, 0)),
        ),
        compiler_params=pltpu.CompilerParams(
            dimension_semantics=("parallel",),
        ),
    )(uid, iid, ut, it, pt)

    return out.reshape(-1)[:B]


def make_positional_encoding(embed_dim, max_len=2000):
    """Matches PositionalEncoding.__init__ (P is a plain tensor, never re-initialized)."""
    assert embed_dim % 2 == 0, "positional encoding requires an even embed_dim"
    pos = jnp.arange(max_len, dtype=jnp.float32).reshape(-1, 1)
    div = jnp.power(
        10000.0, jnp.arange(0, embed_dim, 2, dtype=jnp.float32) / embed_dim
    )
    X = pos / div                                       # (max_len, embed_dim//2)
    P = jnp.zeros((max_len, embed_dim), dtype=jnp.float32)
    P = P.at[:, 0::2].set(jnp.sin(X))
    P = P.at[:, 1::2].set(jnp.cos(X))
    return P


def pemf_forward(user, item, user_embed, item_embed, P):
    """user, item: int32 (B,);  returns float32 (B,)."""
    return pemf_scores(user, item, user_embed, item_embed, P)


if __name__ == "__main__":
    n_users, m_items, embed_dim = 64, 96, 32

    key = jax.random.PRNGKey(0)
    k_u, k_i = jax.random.split(key, 2)

    # nn.init.normal_(param, std=0.01) on both embedding tables
    user_embed = 0.01 * jax.random.normal(k_u, (n_users, embed_dim), jnp.float32)
    item_embed = 0.01 * jax.random.normal(k_i, (m_items, embed_dim), jnp.float32)
    P = make_positional_encoding(embed_dim)

    s = math.sqrt(embed_dim)
    for batch in (8, 200):   # small batch + non-multiple-of-tile batch (padding path)
        kb = jax.random.fold_in(key, batch)
        k_uid, k_iid = jax.random.split(kb)
        user = jax.random.randint(k_uid, (batch,), 0, n_users, dtype=jnp.int32)
        item = jax.random.randint(k_iid, (batch,), 0, m_items, dtype=jnp.int32)

        scores = pemf_forward(user, item, user_embed, item_embed, P)
        scores = jax.block_until_ready(scores)

        # pure-JAX reference check
        P_u = user_embed[user] * s + P[:batch]
        Q_i = item_embed[item] * s + P[:batch]
        ref = jnp.sum(P_u * Q_i, axis=1)
        assert scores.shape == (batch,)
        assert jnp.allclose(scores, ref, atol=1e-5, rtol=1e-5), (
            f"max abs err {float(jnp.max(jnp.abs(scores - ref)))}"
        )

    print("KERNEL_OK")
</pallas_src>

<mosaic_0001>
module attributes {stable_mosaic.version = 11 : i64} {
  func.func @_pemf_kernel(%arg0: i32, %arg1: memref<1x128xi32, #tpu.memory_space<vmem>>, %arg2: memref<1x128xi32, #tpu.memory_space<vmem>>, %arg3: memref<32x64xf32, #tpu.memory_space<vmem>>, %arg4: memref<32x96xf32, #tpu.memory_space<vmem>>, %arg5: memref<32x128xf32, #tpu.memory_space<vmem>>, %arg6: memref<1x128xf32, #tpu.memory_space<vmem>>) attributes {dimension_semantics = [#tpu.dimension_semantics<parallel>], iteration_bounds = array<i64: 1>, scalar_prefetch = 0 : i64, scratch_operands = 0 : i64, tpu.core_type = #tpu.core_type<tc>, window_params = [{transform_indices = @transform_0, window_bounds = array<i64: 1, 128>}, {transform_indices = @transform_1, window_bounds = array<i64: 1, 128>}, {pipeline_mode = #tpu.pipeline_mode<synchronous>, transform_indices = @transform_2, window_bounds = array<i64: 32, 64>}, {pipeline_mode = #tpu.pipeline_mode<synchronous>, transform_indices = @transform_3, window_bounds = array<i64: 32, 96>}, {transform_indices = @transform_4, window_bounds = array<i64: 32, 128>}, {transform_indices = @transform_5, window_bounds = array<i64: 1, 128>}]} {
    %c0 = arith.constant 0 : index
    %c0_0 = arith.constant 0 : index
    %0 = vector.load %arg1[%c0, %c0_0] : memref<1x128xi32, #tpu.memory_space<vmem>>, vector<1x128xi32>
    %c0_1 = arith.constant 0 : index
    %c0_2 = arith.constant 0 : index
    %1 = vector.load %arg2[%c0_1, %c0_2] : memref<1x128xi32, #tpu.memory_space<vmem>>, vector<1x128xi32>
    %2 = tpu.iota {dimensions = array<i32: 0>} : vector<64x128xi32>
    %3 = vector.broadcast %0 : vector<1x128xi32> to vector<64x128xi32>
    %4 = arith.cmpi eq, %2, %3 : vector<64x128xi32>
    %5 = arith.extui %4 : vector<64x128xi1> to vector<64x128xi32>
    %6 = arith.sitofp %5 : vector<64x128xi32> to vector<64x128xf32>
    %7 = tpu.iota {dimensions = array<i32: 0>} : vector<96x128xi32>
    %8 = vector.broadcast %1 : vector<1x128xi32> to vector<96x128xi32>
    %9 = arith.cmpi eq, %7, %8 : vector<96x128xi32>
    %10 = arith.extui %9 : vector<96x128xi1> to vector<96x128xi32>
    %11 = arith.sitofp %10 : vector<96x128xi32> to vector<96x128xf32>
    %c0_3 = arith.constant 0 : index
    %c0_4 = arith.constant 0 : index
    %12 = vector.load %arg3[%c0_3, %c0_4] : memref<32x64xf32, #tpu.memory_space<vmem>>, vector<32x64xf32>
    %cst = arith.constant dense<0.000000e+00> : vector<32x128xf32>
    %13 = tpu.matmul %12, %6, %cst {dimension_numbers = #tpu.dot_dimension_numbers<[1], [0], [0], [1], [0, 0, 1, 1], [], []>} : vector<32x64xf32>, vector<64x128xf32>, vector<32x128xf32> -> vector<32x128xf32>
    %c0_5 = arith.constant 0 : index
    %c0_6 = arith.constant 0 : index
    %14 = vector.load %arg4[%c0_5, %c0_6] : memref<32x96xf32, #tpu.memory_space<vmem>>, vector<32x96xf32>
    %cst_7 = arith.constant dense<0.000000e+00> : vector<32x128xf32>
    %15 = tpu.matmul %14, %11, %cst_7 {dimension_numbers = #tpu.dot_dimension_numbers<[1], [0], [0], [1], [0, 0, 1, 1], [], []>} : vector<32x96xf32>, vector<96x128xf32>, vector<32x128xf32> -> vector<32x128xf32>
    %c0_8 = arith.constant 0 : index
    %c0_9 = arith.constant 0 : index
    %16 = vector.load %arg5[%c0_8, %c0_9] : memref<32x128xf32, #tpu.memory_space<vmem>>, vector<32x128xf32>
    %cst_10 = arith.constant 5.65685415 : f32
    %17 = vector.broadcast %cst_10 : f32 to vector<32x128xf32>
    %18 = arith.mulf %13, %17 : vector<32x128xf32>
    %19 = arith.addf %18, %16 : vector<32x128xf32>
    %cst_11 = arith.constant 5.65685415 : f32
    %20 = vector.broadcast %cst_11 : f32 to vector<32x128xf32>
    %21 = arith.mulf %15, %20 : vector<32x128xf32>
    %22 = arith.addf %21, %16 : vector<32x128xf32>
    %23 = arith.mulf %19, %22 : vector<32x128xf32>
    %cst_12 = arith.constant dense<0.000000e+00> : vector<128xf32>
    %24 = vector.multi_reduction <add>, %23, %cst_12 [0] : vector<32x128xf32> to vector<128xf32>
    %25 = vector.shape_cast %24 : vector<128xf32> to vector<1x128xf32>
    %c0_13 = arith.constant 0 : index
    %c0_14 = arith.constant 0 : index
    %26 = vector.load %arg6[%c0_13, %c0_14] : memref<1x128xf32, #tpu.memory_space<vmem>>, vector<1x128xf32>
    tpu.vector_store %arg6[%c0_13, %c0_14], %25 {strides = array<i32>} : memref<1x128xf32, #tpu.memory_space<vmem>>, vector<1x128xf32>,
    return
  }
  func.func @transform_0(%arg0: i32) -> (i32, i32) {
    %c0_i32 = arith.constant 0 : i32
    %c0_i32_0 = arith.constant 0 : i32
    return %c0_i32, %arg0 : i32, i32
  }
  func.func @transform_1(%arg0: i32) -> (i32, i32) {
    %c0_i32 = arith.constant 0 : i32
    %c0_i32_0 = arith.constant 0 : i32
    return %c0_i32, %arg0 : i32, i32
  }
  func.func @transform_2(%arg0: i32) -> (i32, i32) {
    %c0_i32 = arith.constant 0 : i32
    %c0_i32_0 = arith.constant 0 : i32
    %c0_i32_1 = arith.constant 0 : i32
    return %c0_i32, %c0_i32_0 : i32, i32
  }
  func.func @transform_3(%arg0: i32) -> (i32, i32) {
    %c0_i32 = arith.constant 0 : i32
    %c0_i32_0 = arith.constant 0 : i32
    %c0_i32_1 = arith.constant 0 : i32
    return %c0_i32, %c0_i32_0 : i32, i32
  }
  func.func @transform_4(%arg0: i32) -> (i32, i32) {
    %c0_i32 = arith.constant 0 : i32
    %c0_i32_0 = arith.constant 0 : i32
    return %c0_i32, %arg0 : i32, i32
  }
  func.func @transform_5(%arg0: i32) -> (i32, i32) {
    %c0_i32 = arith.constant 0 : i32
    %c0_i32_0 = arith.constant 0 : i32
    return %arg0, %c0_i32 : i32, i32
  }
}

</mosaic_0001>

<llo_original>
// kernel: tpu_custom_call.1
$region0: #{tpu_custom_call.1}
  #allocation0 [shape = 'u32[]', space=smem, size = 0x4, offset = 0x4, fixed_abs, tag = 'smem constant byte address 0x4 - core index']
  #allocation1 [shape = 'u32[144,128]{1,0:T(1,128)}', space=vmem, size = 0x12000, scoped, tag = 'internal scratch']
  %s0 = inlined_call_operand.hbm [shape: s32[1,128], index: 0, kind: input, shape index: {}]
  %s1 = inlined_call_operand.vmem [shape: s32[1,128], index: 1, kind: input, shape index: {}]
  %s2 = inlined_call_operand.hbm [shape: f32[32,64], index: 2, kind: input, shape index: {}]
  %s3 = inlined_call_operand.hbm [shape: f32[32,96], index: 3, kind: input, shape index: {}]
  %s4 = inlined_call_operand.hbm [shape: f32[32,2000], index: 4, kind: input, shape index: {}]
  %s5 = inlined_call_operand.hbm [shape: f32[1,128], index: 5, kind: output, shape index: {}]
  %s6 = sld [smem:[#allocation0]]
  $region46: #{tpu_custom_call.1} parent=0
    _
  %s8 = ssub.s32 1, %s6
  %s9 = scalar_select 0, %s8, %s6
  $region1: #{tpu_custom_call.1} parent=0
    #allocation2 [shape = 'u8[512]{0}', space=vmem, size = 0x400, scoped, tag = 'input window, operand 0, single buffered']
    #allocation3 [shape = 's32[1]{0}', space=sflag, size = 0x4, scoped, tag = 'scoped memory for tpu_custom_call.1']
    #allocation4 [shape = 's32[1]{0}', space=sflag, size = 0x4, scoped, tag = 'scoped memory for tpu_custom_call.1']
    #allocation5 [shape = 'u8[16384]{0}', space=vmem, size = 0x4000, scoped, tag = 'input window, operand 2, single buffered']
    #allocation6 [shape = 's32[1]{0}', space=sflag, size = 0x4, scoped, tag = 'scoped memory for tpu_custom_call.1']
    #allocation7 [shape = 'u8[16384]{0}', space=vmem, size = 0x4000, scoped, tag = 'input window, operand 3, single buffered']
    #allocation8 [shape = 'u8[16384]{0}', space=vmem, size = 0x4000, scoped, tag = 'input window, operand 4, single buffered']
    #allocation9 [shape = 's32[1]{0}', space=sflag, size = 0x4, scoped, tag = 'scoped memory for tpu_custom_call.1']
    #allocation10 [shape = 'u8[512]{0}', space=vmem, size = 0x400, scoped, tag = 'output window, operand 0, single buffered']
    %10 = vsyncpa [#allocation3], 0
    %11 = vsyncpa [#allocation6], 0
    %12 = vsyncpa [#allocation9], 0
    %13 = vsyncpa [#allocation4], 0
    // Predicated region
    $region2: #{tpu_custom_call.1} parent=1 // pred_check
      _
    $region3: #{tpu_custom_call.1} parent=1 // pred_check_branch
      %15 = sbr.rel (0) target = $region5
    $region4: #{tpu_custom_call.1} parent=1 // pred_region
      %s17 = ssub.s32 16, 16
      %18 = vsyncadd [#allocation3], %s17
      %s20 = sshll.u32 [#allocation2], 4
      %s21 = int_to_ptr.vmem [resolvable:$true] %s20
      %23 = dma.hbm_to_vmem [thread:$0]  %s0, 16, %s21, [#allocation3]
    $region5: #{tpu_custom_call.1} parent=1 // pred_fallthru
      _
    // Predicated region
    $region6: #{tpu_custom_call.1} parent=1 // pred_check
      _
    $region7: #{tpu_custom_call.1} parent=1 // pred_check_branch
      %25 = sbr.rel (0) target = $region9
    $region8: #{tpu_custom_call.1} parent=1 // pred_region
      _
    $region9: #{tpu_custom_call.1} parent=1 // pred_fallthru
      _
    // Predicated region
    $region10: #{tpu_custom_call.1} parent=1 // pred_check
      _
    $region11: #{tpu_custom_call.1} parent=1 // pred_check_branch
      %27 = sbr.rel (0) target = $region13
    $region12: #{tpu_custom_call.1} parent=1 // pred_region
      %s29 = ssub.s32 512, 512
      %30 = vsyncadd [#allocation6], %s29
      %s31 = sshll.u32 [#allocation5], 4
      %s32 = int_to_ptr.vmem [resolvable:$true] %s31
      %37 = dma.hbm_to_vmem [thread:$0]  %s2, 512, %s32, [#allocation6], 128, 128, 8
    $region13: #{tpu_custom_call.1} parent=1 // pred_fallthru
      _
    // Predicated region
    $region14: #{tpu_custom_call.1} parent=1 // pred_check
      _
    $region15: #{tpu_custom_call.1} parent=1 // pred_check_branch
      %39 = sbr.rel (0) target = $region17
    $region16: #{tpu_custom_call.1} parent=1 // pred_region
      %s41 = ssub.s32 512, 512
      %42 = vsyncadd [#allocation6], %s41
      %s43 = sshll.u32 [#allocation7], 4
      %s44 = int_to_ptr.vmem [resolvable:$true] %s43
      %49 = dma.hbm_to_vmem [thread:$0]  %s3, 512, %s44, [#allocation6], 128, 128, 8
    $region17: #{tpu_custom_call.1} parent=1 // pred_fallthru
      _
    // Predicated region
    $region18: #{tpu_custom_call.1} parent=1 // pred_check
      _
    $region19: #{tpu_custom_call.1} parent=1 // pred_check_branch
      %51 = sbr.rel (0) target = $region21
    $region20: #{tpu_custom_call.1} parent=1 // pred_region
      %s53 = ssub.s32 512, 512
      %54 = vsyncadd [#allocation9], %s53
      %s55 = sshll.u32 [#allocation8], 4
      %s56 = int_to_ptr.vmem [resolvable:$true] %s55
      %61 = dma.hbm_to_vmem [thread:$0]  %s4, 512, %s56, [#allocation9], 2048, 128, 8
    $region21: #{tpu_custom_call.1} parent=1 // pred_fallthru
      _
    // Predicated region
    $region22: #{tpu_custom_call.1} parent=1 // pred_check
      _
    $region23: #{tpu_custom_call.1} parent=1 // pred_check_branch
      %63 = sbr.rel (0) target = $region25
    $region24: #{tpu_custom_call.1} parent=1 // pred_region
      %64 = dma.done [#allocation3], 16
    $region25: #{tpu_custom_call.1} parent=1 // pred_fallthru
      _
    // Predicated region
    $region26: #{tpu_custom_call.1} parent=1 // pred_check
      _
    $region27: #{tpu_custom_call.1} parent=1 // pred_check_branch
      %66 = sbr.rel (0) target = $region29
    $region28: #{tpu_custom_call.1} parent=1 // pred_region
      %67 = dma.done [#allocation6], 512
    $region29: #{tpu_custom_call.1} parent=1 // pred_fallthru
      _
    // Predicated region
    $region30: #{tpu_custom_call.1} parent=1 // pred_check
      _
    $region31: #{tpu_custom_call.1} parent=1 // pred_check_branch
      %69 = sbr.rel (0) target = $region33
    $region32: #{tpu_custom_call.1} parent=1 // pred_region
      %70 = dma.done [#allocation6], 512
    $region33: #{tpu_custom_call.1} parent=1 // pred_fallthru
      _
    // Predicated region
    $region34: #{tpu_custom_call.1} parent=1 // pred_check
      _
    $region35: #{tpu_custom_call.1} parent=1 // pred_check_branch
      %72 = sbr.rel (0) target = $region37
    $region36: #{tpu_custom_call.1} parent=1 // pred_region
      %73 = dma.done [#allocation9], 512
    $region37: #{tpu_custom_call.1} parent=1 // pred_fallthru
      _
    %v74 = vld [vmem:[#allocation2] sm:$0x1]
    %v75 = vld [vmem:[%s1] sm:$0x1]
    %v76 = vlaneseq
    %v77 = vshrl.u32 %v76, 7
    %v78 = vadd.s32 %v77, 8
    %v79 = vadd.s32 %v77, 16
    %v80 = vadd.s32 %v77, 24
    %v81 = vadd.s32 %v77, 32
    %v82 = vadd.s32 %v77, 40
    %v83 = vadd.s32 %v77, 48
    %v84 = vadd.s32 %v77, 56
    %v85 = vlaneseq
    %v86 = vshrl.u32 %v85, 7
    %v87 = vsub.s32 0, %v86
    %v88 = vrot.slane %v74, %v87
    %vm89 = vcmp.eq.s32.totalorder %v77, %v88
    %vm90 = vcmp.eq.s32.totalorder %v78, %v88
    %vm91 = vcmp.eq.s32.totalorder %v79, %v88
    %vm92 = vcmp.eq.s32.totalorder %v80, %v88
    %vm93 = vcmp.eq.s32.totalorder %v81, %v88
    %vm94 = vcmp.eq.s32.totalorder %v82, %v88
    %vm95 = vcmp.eq.s32.totalorder %v83, %v88
    %vm96 = vcmp.eq.s32.totalorder %v84, %v88
    %v97 = vsel %vm89, 1, 0
    %v98 = vsel %vm90, 1, 0
    %v99 = vsel %vm91, 1, 0
    %v100 = vsel %vm92, 1, 0
    %v101 = vsel %vm93, 1, 0
    %v102 = vsel %vm94, 1, 0
    %v103 = vsel %vm95, 1, 0
    %v104 = vsel %vm96, 1, 0
    %v105 = vcvt.s32.f32 %v97
    %v106 = vcvt.s32.f32 %v98
    %v107 = vcvt.s32.f32 %v99
    %v108 = vcvt.s32.f32 %v100
    %v109 = vcvt.s32.f32 %v101
    %v110 = vcvt.s32.f32 %v102
    %v111 = vcvt.s32.f32 %v103
    %v112 = vcvt.s32.f32 %v104
    %v113 = vadd.s32 %v77, 64
    %v114 = vadd.s32 %v77, 72
    %v115 = vadd.s32 %v77, 80
    %v116 = vadd.s32 %v77, 88
    %v117 = vlaneseq
    %v118 = vshrl.u32 %v117, 7
    %v119 = vsub.s32 0, %v118
    %v120 = vrot.slane %v75, %v119
    %vm121 = vcmp.eq.s32.totalorder %v77, %v120
    %vm122 = vcmp.eq.s32.totalorder %v78, %v120
    %vm123 = vcmp.eq.s32.totalorder %v79, %v120
    %vm124 = vcmp.eq.s32.totalorder %v80, %v120
    %vm125 = vcmp.eq.s32.totalorder %v81, %v120
    %vm126 = vcmp.eq.s32.totalorder %v82, %v120
    %vm127 = vcmp.eq.s32.totalorder %v83, %v120
    %vm128 = vcmp.eq.s32.totalorder %v84, %v120
    %vm129 = vcmp.eq.s32.totalorder %v113, %v120
    %vm130 = vcmp.eq.s32.totalorder %v114, %v120
    %vm131 = vcmp.eq.s32.totalorder %v115, %v120
    %vm132 = vcmp.eq.s32.totalorder %v116, %v120
    %v133 = vsel %vm121, 1, 0
    %v134 = vsel %vm122, 1, 0
    %v135 = vsel %vm123, 1, 0
    %v136 = vsel %vm124, 1, 0
    %v137 = vsel %vm125, 1, 0
    %v138 = vsel %vm126, 1, 0
    %v139 = vsel %vm127, 1, 0
    %v140 = vsel %vm128, 1, 0
    %v141 = vsel %vm129, 1, 0
    %v142 = vsel %vm130, 1, 0
    %v143 = vsel %vm131, 1, 0
    %v144 = vsel %vm132, 1, 0
    %v145 = vcvt.s32.f32 %v133
    %v146 = vcvt.s32.f32 %v134
    %v147 = vcvt.s32.f32 %v135
    %v148 = vcvt.s32.f32 %v136
    %v149 = vcvt.s32.f32 %v137
    %v150 = vcvt.s32.f32 %v138
    %v151 = vcvt.s32.f32 %v139
    %v152 = vcvt.s32.f32 %v140
    %v153 = vcvt.s32.f32 %v141
    %v154 = vcvt.s32.f32 %v142
    %v155 = vcvt.s32.f32 %v143
    %v156 = vcvt.s32.f32 %v144
    %v157 = vld [vmem:[#allocation5] sm:$0xff]
    %v158 = vld [vmem:[#allocation5 + $0x8] sm:$0xff]
    %v159 = vld [vmem:[#allocation5 + $0x10] sm:$0xff]
    %v160 = vld [vmem:[#allocation5 + $0x18] sm:$0xff]
    %vm161 = vcmask 523264
    %v163 = vsel %vm161, %v157, 0
    %v166 = vsel %vm161, %v158, 0
    %v169 = vsel %vm161, %v159, 0
    %v172 = vsel %vm161, %v160, 0
    %174 = vmatprep.subr.mxu0 0.0
    %175 = vmatpush1.msra.mxu0 %v105
    %176 = vmatprep.subr.mxu0 0.0
    %177 = vmatpush1.msra.mxu0 %v106
    %178 = vmatprep.subr.mxu0 0.0
    %179 = vmatpush1.msra.mxu0 %v107
    %180 = vmatprep.subr.mxu0 0.0
    %181 = vmatpush1.msra.mxu0 %v108
    %182 = vmatprep.subr.mxu0 0.0
    %183 = vmatpush1.msra.mxu0 %v109
    %184 = vmatprep.subr.mxu0 0.0
    %185 = vmatpush1.msra.mxu0 %v110
    %186 = vmatprep.subr.mxu0 0.0
    %187 = vmatpush1.msra.mxu0 %v111
    %188 = vmatprep.subr.mxu0 0.0
    %189 = vmatpush1.msra.mxu0 %v112
    %190 = vmatprep.subr.mxu0 0.0
    %191 = vmatpush1.msra.mxu0 0.0
    %192 = vmatprep.subr.mxu0 0.0
    %193 = vmatpush1.msra.mxu0 0.0
    %194 = vmatprep.subr.mxu0 0.0
    %195 = vmatpush1.msra.mxu0 0.0
    %196 = vmatprep.subr.mxu0 0.0
    %197 = vmatpush1.msra.mxu0 0.0
    %198 = vmatprep.subr.mxu0 0.0
    %199 = vmatpush1.msra.mxu0 0.0
    %200 = vmatprep.subr.mxu0 0.0
    %201 = vmatpush1.msra.mxu0 0.0
    %202 = vmatprep.subr.mxu0 0.0
    %203 = vmatpush1.msra.mxu0 0.0
    %204 = vmatprep.subr.mxu0 0.0
    %205 = vmatpush1.msra.mxu0 0.0
    %206 = vmatprep.subr.mxu0 0.0
    %207 = vmatpush1.msra.mxu0 0.0
    %208 = vmatprep.subr.mxu0 0.0
    %209 = vmatpush1.msra.mxu0 0.0
    %210 = vmatprep.subr.mxu0 0.0
    %211 = vmatpush1.msra.mxu0 0.0
    %212 = vmatprep.subr.mxu0 0.0
    %213 = vmatpush1.msra.mxu0 0.0
    %214 = vmatprep.subr.mxu0 0.0
    %215 = vmatpush1.msra.mxu0 0.0
    %216 = vmatprep.subr.mxu0 0.0
    %217 = vmatpush1.msra.mxu0 0.0
    %218 = vmatprep.subr.mxu0 0.0
    %219 = vmatpush1.msra.mxu0 0.0
    %220 = vmatprep.subr.mxu0 0.0
    %221 = vmatpush1.msra.mxu0 0.0
    %222 = vmatprep.subr.mxu0 0.0
    %223 = vmatpush1.msra.mxu0 0.0
    %224 = vmatprep.subr.mxu0 0.0
    %225 = vmatpush1.msra.mxu0 0.0
    %226 = vmatprep.subr.mxu0 0.0
    %227 = vmatpush1.msra.mxu0 0.0
    %228 = vmatprep.subr.mxu0 0.0
    %229 = vmatpush1.msra.mxu0 0.0
    %230 = vmatprep.subr.mxu0 0.0
    %231 = vmatpush1.msra.mxu0 0.0
    %232 = vmatprep.subr.mxu0 0.0
    %233 = vmatpush1.msra.mxu0 0.0
    %234 = vmatprep.subr.mxu0 0.0
    %235 = vmatpush1.msra.mxu0 0.0
    %236 = vmatprep.subr.mxu0 0.0
    %237 = vmatpush1.msra.mxu0 0.0
    %238 = vmatprep.mubr.f32.mxu0 0.0
    %239 = vmatmul.mubr.f32.gmra.mrb[0].mxu0 %v163
    %v240 = vpop.f32.mrb[0].mxu0
    %v241 = vadd.f32 0.0, %v240
    %v242 = vpop.f32.mrb[0].mxu0
    %243 = vmatprep.mubr.f32.mxu0 0.0
    %244 = vmatmul.mubr.f32.gmra.mrb[0].mxu0 %v166
    %v245 = vpop.f32.mrb[0].mxu0
    %v246 = vadd.f32 0.0, %v245
    %v247 = vpop.f32.mrb[0].mxu0
    %248 = vmatprep.mubr.f32.mxu0 0.0
    %249 = vmatmul.mubr.f32.gmra.mrb[0].mxu0 %v169
    %v250 = vpop.f32.mrb[0].mxu0
    %v251 = vadd.f32 0.0, %v250
    %v252 = vpop.f32.mrb[0].mxu0
    %253 = vmatprep.mubr.f32.mxu0 0.0
    %254 = vmatmul.mubr.f32.gmra.mrb[0].mxu0 %v172
    %v255 = vpop.f32.mrb[0].mxu0
    %v256 = vadd.f32 0.0, %v255
    %v257 = vpop.f32.mrb[0].mxu0
    %258 = vdwg.mxu0
    %v259 = vld [vmem:[#allocation7] sm:$0xff]
    %v260 = vld [vmem:[#allocation7 + $0x8] sm:$0xff]
    %v261 = vld [vmem:[#allocation7 + $0x10] sm:$0xff]
    %v262 = vld [vmem:[#allocation7 + $0x18] sm:$0xff]
    %vm263 = vcmask 785408
    %v265 = vsel %vm263, %v259, 0
    %v268 = vsel %vm263, %v260, 0
    %v271 = vsel %vm263, %v261, 0
    %v274 = vsel %vm263, %v262, 0
    %276 = vmatprep.subr.mxu0 0.0
    %277 = vmatpush1.msra.mxu0 %v145
    %278 = vmatprep.subr.mxu0 0.0
    %279 = vmatpush1.msra.mxu0 %v146
    %280 = vmatprep.subr.mxu0 0.0
    %281 = vmatpush1.msra.mxu0 %v147
    %282 = vmatprep.subr.mxu0 0.0
    %283 = vmatpush1.msra.mxu0 %v148
    %284 = vmatprep.subr.mxu0 0.0
    %285 = vmatpush1.msra.mxu0 %v149
    %286 = vmatprep.subr.mxu0 0.0
    %287 = vmatpush1.msra.mxu0 %v150
    %288 = vmatprep.subr.mxu0 0.0
    %289 = vmatpush1.msra.mxu0 %v151
    %290 = vmatprep.subr.mxu0 0.0
    %291 = vmatpush1.msra.mxu0 %v152
    %292 = vmatprep.subr.mxu0 0.0
    %293 = vmatpush1.msra.mxu0 %v153
    %294 = vmatprep.subr.mxu0 0.0
    %295 = vmatpush1.msra.mxu0 %v154
    %296 = vmatprep.subr.mxu0 0.0
    %297 = vmatpush1.msra.mxu0 %v155
    %298 = vmatprep.subr.mxu0 0.0
    %299 = vmatpush1.msra.mxu0 %v156
    %300 = vmatprep.subr.mxu0 0.0
    %301 = vmatpush1.msra.mxu0 0.0
    %302 = vmatprep.subr.mxu0 0.0
    %303 = vmatpush1.msra.mxu0 0.0
    %304 = vmatprep.subr.mxu0 0.0
    %305 = vmatpush1.msra.mxu0 0.0
    %306 = vmatprep.subr.mxu0 0.0
    %307 = vmatpush1.msra.mxu0 0.0
    %308 = vmatprep.subr.mxu0 0.0
    %309 = vmatpush1.msra.mxu0 0.0
    %310 = vmatprep.subr.mxu0 0.0
    %311 = vmatpush1.msra.mxu0 0.0
    %312 = vmatprep.subr.mxu0 0.0
    %313 = vmatpush1.msra.mxu0 0.0
    %314 = vmatprep.subr.mxu0 0.0
    %315 = vmatpush1.msra.mxu0 0.0
    %316 = vmatprep.subr.mxu0 0.0
    %317 = vmatpush1.msra.mxu0 0.0
    %318 = vmatprep.subr.mxu0 0.0
    %319 = vmatpush1.msra.mxu0 0.0
    %320 = vmatprep.subr.mxu0 0.0
    %321 = vmatpush1.msra.mxu0 0.0
    %322 = vmatprep.subr.mxu0 0.0
    %323 = vmatpush1.msra.mxu0 0.0
    %324 = vmatprep.subr.mxu0 0.0
    %325 = vmatpush1.msra.mxu0 0.0
    %326 = vmatprep.subr.mxu0 0.0
    %327 = vmatpush1.msra.mxu0 0.0
    %328 = vmatprep.subr.mxu0 0.0
    %329 = vmatpush1.msra.mxu0 0.0
    %330 = vmatprep.subr.mxu0 0.0
    %331 = vmatpush1.msra.mxu0 0.0
    %332 = vmatprep.subr.mxu0 0.0
    %333 = vmatpush1.msra.mxu0 0.0
    %334 = vmatprep.subr.mxu0 0.0
    %335 = vmatpush1.msra.mxu0 0.0
    %336 = vmatprep.subr.mxu0 0.0
    %337 = vmatpush1.msra.mxu0 0.0
    %338 = vmatprep.subr.mxu0 0.0
    %339 = vmatpush1.msra.mxu0 0.0
    %340 = vmatprep.mubr.f32.mxu0 0.0
    %341 = vmatmul.mubr.f32.gmra.mrb[0].mxu0 %v265
    %v342 = vpop.f32.mrb[0].mxu0
    %v343 = vadd.f32 0.0, %v342
    %v344 = vpop.f32.mrb[0].mxu0
    %345 = vmatprep.mubr.f32.mxu0 0.0
    %346 = vmatmul.mubr.f32.gmra.mrb[0].mxu0 %v268
    %v347 = vpop.f32.mrb[0].mxu0
    %v348 = vadd.f32 0.0, %v347
    %v349 = vpop.f32.mrb[0].mxu0
    %350 = vmatprep.mubr.f32.mxu0 0.0
    %351 = vmatmul.mubr.f32.gmra.mrb[0].mxu0 %v271
    %v352 = vpop.f32.mrb[0].mxu0
    %v353 = vadd.f32 0.0, %v352
    %v354 = vpop.f32.mrb[0].mxu0
    %355 = vmatprep.mubr.f32.mxu0 0.0
    %356 = vmatmul.mubr.f32.gmra.mrb[0].mxu0 %v274
    %v357 = vpop.f32.mrb[0].mxu0
    %v358 = vadd.f32 0.0, %v357
    %v359 = vpop.f32.mrb[0].mxu0
    %360 = vdwg.mxu0
    %v361 = vld [vmem:[#allocation8] sm:$0xff]
    %v362 = vld [vmem:[#allocation8 + $0x8] sm:$0xff]
    %v363 = vld [vmem:[#allocation8 + $0x10] sm:$0xff]
    %v364 = vld [vmem:[#allocation8 + $0x18] sm:$0xff]
    %v365 = vmul.f32 %v241, 5.656854
    %v366 = vmul.f32 %v246, 5.656854
    %v367 = vmul.f32 %v251, 5.656854
    %v368 = vmul.f32 %v256, 5.656854
    %v369 = vadd.f32 %v365, %v361
    %v370 = vadd.f32 %v366, %v362
    %v371 = vadd.f32 %v367, %v363
    %v372 = vadd.f32 %v368, %v364
    %v373 = vmul.f32 %v343, 5.656854
    %v374 = vmul.f32 %v348, 5.656854
    %v375 = vmul.f32 %v353, 5.656854
    %v376 = vmul.f32 %v358, 5.656854
    %v377 = vadd.f32 %v373, %v361
    %v378 = vadd.f32 %v374, %v362
    %v379 = vadd.f32 %v375, %v363
    %v380 = vadd.f32 %v376, %v364
    %v381 = vmul.f32 %v369, %v377
    %v382 = vmul.f32 %v370, %v378
    %v383 = vmul.f32 %v371, %v379
    %v384 = vmul.f32 %v372, %v380
    %v385 = vadd.f32 %v381, %v382
    %v386 = vadd.f32 %v385, %v383
    %v387 = vadd.f32 %v386, %v384
    %v388 = vrot.slane %v387, 4
    %v389 = vadd.f32 %v387, %v388
    %v390 = vrot.slane %v389, 2
    %v391 = vadd.f32 %v389, %v390
    %v392 = vrot.slane %v391, 1
    %v393 = vadd.f32 %v391, %v392
    %394 = vst [vmem:[#allocation10] sm:$0x1] %v393
    // Predicated region
    $region38: #{tpu_custom_call.1} parent=1 // pred_check
      _
    $region39: #{tpu_custom_call.1} parent=1 // pred_check_branch
      %396 = sbr.rel (0) target = $region41
    $region40: #{tpu_custom_call.1} parent=1 // pred_region
      %s398 = ssub.s32 16, 16
      %399 = vsyncadd [#allocation4], %s398
      %s401 = sshll.u32 [#allocation10], 4
      %s402 = int_to_ptr.vmem [resolvable:$true] %s401
      %404 = dma.vmem_to_hbm [thread:$0]  %s402, 16, %s5, [#allocation4]
    $region41: #{tpu_custom_call.1} parent=1 // pred_fallthru
      _
    // Predicated region
    $region42: #{tpu_custom_call.1} parent=1 // pred_check
      _
    $region43: #{tpu_custom_call.1} parent=1 // pred_check_branch
      %406 = sbr.rel (0) target = $region45
    $region44: #{tpu_custom_call.1} parent=1 // pred_region
      %407 = dma.done [#allocation4], 16
    $region45: #{tpu_custom_call.1} parent=1 // pred_fallthru
      _
    %408 = vsyncpa [#allocation3], 1
    %409 = vsyncpa [#allocation6], 1
    %410 = vsyncpa [#allocation9], 1
    %411 = vsyncpa [#allocation4], 1

</llo_original>
